<compile_context>
chip_gen: v7x
topology: tpu7x:2x2x1
jax: 0.10.0
libtpu: 0.0.40
codegen_flags: <defaults>
</compile_context>

<pallas_src>
import jax
import jax.numpy as jnp
from jax import lax
from jax.experimental import pallas as pl
from jax.experimental.pallas import tpu as pltpu

# Small, forward-consistent shapes (module: in_features=F, seq_len=S,
# latent_dim=L, hidden_dim=H, num_classes=C).
B, S, F = 2, 8, 16
L, H, C = 32, 64, 1

TB = 8          # batch tile = one f32 sublane group
CP = 128        # lane-padded fc2 output width (valid columns = C)


def rnn_forward_kernel(x_ref, w_in_ref, b_in_ref, whh_ref, w2_ref, b2_ref,
                       out_ref, z_ref):
    """One batch tile: hoisted input projection + serial tanh recurrence + fc2."""
    # Input projection for ALL timesteps of this tile in a single MXU matmul.
    # x_ref: (S*TB, F) bf16, w_in: (F, H) bf16 -> z: (S*TB, H) f32.
    z_ref[...] = (
        jnp.dot(x_ref[...], w_in_ref[...], preferred_element_type=jnp.float32)
        + b_in_ref[...])

    whh = whh_ref[...]                        # (H, H) bf16, loaded once

    def step(t, h):                           # h: (TB, H) f32
        row = pl.multiple_of(t * TB, TB)      # aligned sublane-tile slice
        z_t = z_ref[pl.ds(row, TB), :]        # (TB, H) f32
        return jnp.tanh(
            z_t + jnp.dot(h.astype(jnp.bfloat16), whh,
                          preferred_element_type=jnp.float32))

    h0 = jnp.zeros((TB, H), dtype=jnp.float32)
    h_last = lax.fori_loop(0, S, step, h0, unroll=True)

    # fc2 on the last hidden state; output lane-padded to CP=128 -> unmasked stores.
    out_ref[...] = (
        jnp.dot(h_last.astype(jnp.bfloat16), w2_ref[...],
                preferred_element_type=jnp.float32)
        + b2_ref[...])


def rnn_forward(x, params):
    B_in = x.shape[0]
    n_tiles = pl.cdiv(B_in, TB)
    Bp = n_tiles * TB

    # ---- fold fc1 into the RNN input projection (no nonlinearity in between) ----
    w_in = (params["w1"] @ params["wih"]).astype(jnp.bfloat16)            # (F, H)
    b_in = params["b1"] @ params["wih"] + params["bih"] + params["bhh"]   # (1, H) f32
    whh = params["whh"].astype(jnp.bfloat16)                              # (H, H)
    # lane-pad fc2 so the final store is lane-dense
    w2p = jnp.zeros((H, CP), jnp.float32).at[:, :C].set(params["w2"]).astype(jnp.bfloat16)
    b2p = jnp.zeros((1, CP), jnp.float32).at[:, :C].set(params["b2"])

    # ---- layout: (B,S,F) -> seq-major, batch zero-padded to Bp, grouped per
    #      batch tile as (n_tiles, S*TB, F) so per-step rows are contiguous ----
    xs = jnp.transpose(x, (1, 0, 2))                       # (S, B, F)
    xs = jnp.pad(xs, ((0, 0), (0, Bp - B_in), (0, 0)))     # (S, Bp, F)
    xs = xs.reshape(S, n_tiles, TB, F).transpose(1, 0, 2, 3).reshape(n_tiles, S * TB, F)
    xs = xs.astype(jnp.bfloat16)

    out = pl.pallas_call(
        rnn_forward_kernel,
        out_shape=jax.ShapeDtypeStruct((Bp, CP), jnp.float32),
        grid_spec=pltpu.PrefetchScalarGridSpec(
            num_scalar_prefetch=0,
            grid=(n_tiles,),
            in_specs=[
                pl.BlockSpec((None, S * TB, F), lambda i: (i, 0, 0)),   # x tile
                pl.BlockSpec((F, H), lambda i: (0, 0)),                 # fused W_in
                pl.BlockSpec((1, H), lambda i: (0, 0)),                 # fused bias
                pl.BlockSpec((H, H), lambda i: (0, 0)),                 # W_hh
                pl.BlockSpec((H, CP), lambda i: (0, 0)),                # fc2 W (padded)
                pl.BlockSpec((1, CP), lambda i: (0, 0)),                # fc2 b (padded)
            ],
            out_specs=pl.BlockSpec((TB, CP), lambda i: (i, 0)),
            scratch_shapes=[pltpu.VMEM((S * TB, H), jnp.float32)],      # hoisted Z
        ),
        compiler_params=pltpu.CompilerParams(
            dimension_semantics=("parallel",)),
    )(xs, w_in, b_in, whh, w2p, b2p)

    return out[:B_in, :C]


def ref_forward(x, p):
    """Pure-JAX f32 reference matching the PyTorch module semantics."""
    z = x @ p["w1"] + p["b1"]                              # fc1: (B, S, L)
    h = jnp.zeros((x.shape[0], H), dtype=jnp.float32)
    for t in range(S):
        h = jnp.tanh(z[:, t, :] @ p["wih"] + h @ p["whh"] + p["bih"] + p["bhh"])
    return h @ p["w2"] + p["b2"]


def init_params(key):
    ks = jax.random.split(key, 8)

    def u(k, shape, fan_in):
        bound = 1.0 / jnp.sqrt(jnp.float32(fan_in))
        return jax.random.uniform(k, shape, jnp.float32, -bound, bound)

    return {
        # fc1: Linear(F, L); stored transposed (F, L), bias (1, L)
        "w1":  u(ks[0], (F, L), F),
        "b1":  u(ks[1], (1, L), F),
        # nn.RNN weights: W_ih (H, L) / W_hh (H, H) in torch -> stored transposed
        "wih": u(ks[2], (L, H), H),
        "whh": u(ks[3], (H, H), H),
        "bih": u(ks[4], (1, H), H),
        "bhh": u(ks[5], (1, H), H),
        # fc2: Linear(H, C)
        "w2":  u(ks[6], (H, C), H),
        "b2":  u(ks[7], (1, C), H),
    }


if __name__ == "__main__":
    key = jax.random.PRNGKey(0)
    kx, kp = jax.random.split(key)
    x = jax.random.normal(kx, (B, S, F), dtype=jnp.float32)
    params = init_params(kp)

    out = rnn_forward(x, params)
    out = jax.block_until_ready(out)

    ref = ref_forward(x, params)
    assert out.shape == (B, C)
    # bf16 MXU operands with f32 accumulation -> loose tolerance vs f32 reference.
    assert jnp.allclose(out, ref, atol=2e-2, rtol=2e-2), (out, ref)
    print("KERNEL_OK")
</pallas_src>

<mosaic_0001>
module attributes {stable_mosaic.version = 11 : i64} {
  func.func @rnn_forward_kernel(%arg0: i32, %arg1: memref<1x64x16xbf16, #tpu.memory_space<vmem>>, %arg2: memref<16x64xbf16, #tpu.memory_space<vmem>>, %arg3: memref<1x64xf32, #tpu.memory_space<vmem>>, %arg4: memref<64x64xbf16, #tpu.memory_space<vmem>>, %arg5: memref<64x128xbf16, #tpu.memory_space<vmem>>, %arg6: memref<1x128xf32, #tpu.memory_space<vmem>>, %arg7: memref<8x128xf32, #tpu.memory_space<vmem>>, %arg8: memref<64x64xf32, #tpu.memory_space<vmem>>) attributes {dimension_semantics = [#tpu.dimension_semantics<parallel>], iteration_bounds = array<i64: 1>, scalar_prefetch = 0 : i64, scratch_operands = 1 : i64, tpu.core_type = #tpu.core_type<tc>, window_params = [{transform_indices = @transform_0, window_bounds = array<i64: 1, 64, 16>}, {pipeline_mode = #tpu.pipeline_mode<synchronous>, transform_indices = @transform_1, window_bounds = array<i64: 16, 64>}, {pipeline_mode = #tpu.pipeline_mode<synchronous>, transform_indices = @transform_2, window_bounds = array<i64: 1, 64>}, {pipeline_mode = #tpu.pipeline_mode<synchronous>, transform_indices = @transform_3, window_bounds = array<i64: 64, 64>}, {pipeline_mode = #tpu.pipeline_mode<synchronous>, transform_indices = @transform_4, window_bounds = array<i64: 64, 128>}, {pipeline_mode = #tpu.pipeline_mode<synchronous>, transform_indices = @transform_5, window_bounds = array<i64: 1, 128>}, {transform_indices = @transform_6, window_bounds = array<i64: 8, 128>}]} {
    %c0 = arith.constant 0 : index
    %c0_0 = arith.constant 0 : index
    %c0_1 = arith.constant 0 : index
    %0 = vector.load %arg1[%c0, %c0_0, %c0_1] : memref<1x64x16xbf16, #tpu.memory_space<vmem>>, vector<1x64x16xbf16>
    %1 = vector.shape_cast %0 : vector<1x64x16xbf16> to vector<64x16xbf16>
    %c0_2 = arith.constant 0 : index
    %c0_3 = arith.constant 0 : index
    %2 = vector.load %arg2[%c0_2, %c0_3] : memref<16x64xbf16, #tpu.memory_space<vmem>>, vector<16x64xbf16>
    %cst = arith.constant dense<0.000000e+00> : vector<64x64xf32>
    %3 = tpu.matmul %1, %2, %cst {dimension_numbers = #tpu.dot_dimension_numbers<[1], [0], [0], [1], [0, 0, 1, 1], [], []>} : vector<64x16xbf16>, vector<16x64xbf16>, vector<64x64xf32> -> vector<64x64xf32>
    %c0_4 = arith.constant 0 : index
    %c0_5 = arith.constant 0 : index
    %4 = vector.load %arg3[%c0_4, %c0_5] : memref<1x64xf32, #tpu.memory_space<vmem>>, vector<1x64xf32>
    %5 = vector.broadcast %4 : vector<1x64xf32> to vector<64x64xf32>
    %6 = arith.addf %3, %5 : vector<64x64xf32>
    %c0_6 = arith.constant 0 : index
    %c0_7 = arith.constant 0 : index
    %7 = vector.load %arg8[%c0_6, %c0_7] : memref<64x64xf32, #tpu.memory_space<vmem>>, vector<64x64xf32>
    tpu.vector_store %arg8[%c0_6, %c0_7], %6 {strides = array<i32>} : memref<64x64xf32, #tpu.memory_space<vmem>>, vector<64x64xf32>,
    %c0_8 = arith.constant 0 : index
    %c0_9 = arith.constant 0 : index
    %8 = vector.load %arg4[%c0_8, %c0_9] : memref<64x64xbf16, #tpu.memory_space<vmem>>, vector<64x64xbf16>
    %cst_10 = arith.constant 0.000000e+00 : f32
    %9 = vector.broadcast %cst_10 : f32 to vector<8x64xf32>
    %c0_i32 = arith.constant 0 : i32
    %c8_i32 = arith.constant 8 : i32
    %10 = arith.muli %c0_i32, %c8_i32 : i32
    %11 = tpu.assume_multiple %10, 8 : i32
    %12 = arith.index_cast %11 : i32 to index
    %c0_11 = arith.constant 0 : index
    %13 = vector.load %arg8[%12, %c0_11] : memref<64x64xf32, #tpu.memory_space<vmem>>, vector<8x64xf32>
    %14 = arith.truncf %9 : vector<8x64xf32> to vector<8x64xbf16>
    %cst_12 = arith.constant dense<0.000000e+00> : vector<8x64xf32>
    %15 = tpu.matmul %14, %8, %cst_12 {dimension_numbers = #tpu.dot_dimension_numbers<[1], [0], [0], [1], [0, 0, 1, 1], [], []>} : vector<8x64xbf16>, vector<64x64xbf16>, vector<8x64xf32> -> vector<8x64xf32>
    %16 = arith.addf %13, %15 : vector<8x64xf32>
    %17 = math.tanh %16 : vector<8x64xf32>
    %c1_i32 = arith.constant 1 : i32
    %c8_i32_13 = arith.constant 8 : i32
    %18 = arith.muli %c1_i32, %c8_i32_13 : i32
    %19 = tpu.assume_multiple %18, 8 : i32
    %20 = arith.index_cast %19 : i32 to index
    %c0_14 = arith.constant 0 : index
    %21 = vector.load %arg8[%20, %c0_14] : memref<64x64xf32, #tpu.memory_space<vmem>>, vector<8x64xf32>
    %22 = arith.truncf %17 : vector<8x64xf32> to vector<8x64xbf16>
    %cst_15 = arith.constant dense<0.000000e+00> : vector<8x64xf32>
    %23 = tpu.matmul %22, %8, %cst_15 {dimension_numbers = #tpu.dot_dimension_numbers<[1], [0], [0], [1], [0, 0, 1, 1], [], []>} : vector<8x64xbf16>, vector<64x64xbf16>, vector<8x64xf32> -> vector<8x64xf32>
    %24 = arith.addf %21, %23 : vector<8x64xf32>
    %25 = math.tanh %24 : vector<8x64xf32>
    %c2_i32 = arith.constant 2 : i32
    %c8_i32_16 = arith.constant 8 : i32
    %26 = arith.muli %c2_i32, %c8_i32_16 : i32
    %27 = tpu.assume_multiple %26, 8 : i32
    %28 = arith.index_cast %27 : i32 to index
    %c0_17 = arith.constant 0 : index
    %29 = vector.load %arg8[%28, %c0_17] : memref<64x64xf32, #tpu.memory_space<vmem>>, vector<8x64xf32>
    %30 = arith.truncf %25 : vector<8x64xf32> to vector<8x64xbf16>
    %cst_18 = arith.constant dense<0.000000e+00> : vector<8x64xf32>
    %31 = tpu.matmul %30, %8, %cst_18 {dimension_numbers = #tpu.dot_dimension_numbers<[1], [0], [0], [1], [0, 0, 1, 1], [], []>} : vector<8x64xbf16>, vector<64x64xbf16>, vector<8x64xf32> -> vector<8x64xf32>
    %32 = arith.addf %29, %31 : vector<8x64xf32>
    %33 = math.tanh %32 : vector<8x64xf32>
    %c3_i32 = arith.constant 3 : i32
    %c8_i32_19 = arith.constant 8 : i32
    %34 = arith.muli %c3_i32, %c8_i32_19 : i32
    %35 = tpu.assume_multiple %34, 8 : i32
    %36 = arith.index_cast %35 : i32 to index
    %c0_20 = arith.constant 0 : index
    %37 = vector.load %arg8[%36, %c0_20] : memref<64x64xf32, #tpu.memory_space<vmem>>, vector<8x64xf32>
    %38 = arith.truncf %33 : vector<8x64xf32> to vector<8x64xbf16>
    %cst_21 = arith.constant dense<0.000000e+00> : vector<8x64xf32>
    %39 = tpu.matmul %38, %8, %cst_21 {dimension_numbers = #tpu.dot_dimension_numbers<[1], [0], [0], [1], [0, 0, 1, 1], [], []>} : vector<8x64xbf16>, vector<64x64xbf16>, vector<8x64xf32> -> vector<8x64xf32>
    %40 = arith.addf %37, %39 : vector<8x64xf32>
    %41 = math.tanh %40 : vector<8x64xf32>
    %c4_i32 = arith.constant 4 : i32
    %c8_i32_22 = arith.constant 8 : i32
    %42 = arith.muli %c4_i32, %c8_i32_22 : i32
    %43 = tpu.assume_multiple %42, 8 : i32
    %44 = arith.index_cast %43 : i32 to index
    %c0_23 = arith.constant 0 : index
    %45 = vector.load %arg8[%44, %c0_23] : memref<64x64xf32, #tpu.memory_space<vmem>>, vector<8x64xf32>
    %46 = arith.truncf %41 : vector<8x64xf32> to vector<8x64xbf16>
    %cst_24 = arith.constant dense<0.000000e+00> : vector<8x64xf32>
    %47 = tpu.matmul %46, %8, %cst_24 {dimension_numbers = #tpu.dot_dimension_numbers<[1], [0], [0], [1], [0, 0, 1, 1], [], []>} : vector<8x64xbf16>, vector<64x64xbf16>, vector<8x64xf32> -> vector<8x64xf32>
    %48 = arith.addf %45, %47 : vector<8x64xf32>
    %49 = math.tanh %48 : vector<8x64xf32>
    %c5_i32 = arith.constant 5 : i32
    %c8_i32_25 = arith.constant 8 : i32
    %50 = arith.muli %c5_i32, %c8_i32_25 : i32
    %51 = tpu.assume_multiple %50, 8 : i32
    %52 = arith.index_cast %51 : i32 to index
    %c0_26 = arith.constant 0 : index
    %53 = vector.load %arg8[%52, %c0_26] : memref<64x64xf32, #tpu.memory_space<vmem>>, vector<8x64xf32>
    %54 = arith.truncf %49 : vector<8x64xf32> to vector<8x64xbf16>
    %cst_27 = arith.constant dense<0.000000e+00> : vector<8x64xf32>
    %55 = tpu.matmul %54, %8, %cst_27 {dimension_numbers = #tpu.dot_dimension_numbers<[1], [0], [0], [1], [0, 0, 1, 1], [], []>} : vector<8x64xbf16>, vector<64x64xbf16>, vector<8x64xf32> -> vector<8x64xf32>
    %56 = arith.addf %53, %55 : vector<8x64xf32>
    %57 = math.tanh %56 : vector<8x64xf32>
    %c6_i32 = arith.constant 6 : i32
    %c8_i32_28 = arith.constant 8 : i32
    %58 = arith.muli %c6_i32, %c8_i32_28 : i32
    %59 = tpu.assume_multiple %58, 8 : i32
    %60 = arith.index_cast %59 : i32 to index
    %c0_29 = arith.constant 0 : index
    %61 = vector.load %arg8[%60, %c0_29] : memref<64x64xf32, #tpu.memory_space<vmem>>, vector<8x64xf32>
    %62 = arith.truncf %57 : vector<8x64xf32> to vector<8x64xbf16>
    %cst_30 = arith.constant dense<0.000000e+00> : vector<8x64xf32>
    %63 = tpu.matmul %62, %8, %cst_30 {dimension_numbers = #tpu.dot_dimension_numbers<[1], [0], [0], [1], [0, 0, 1, 1], [], []>} : vector<8x64xbf16>, vector<64x64xbf16>, vector<8x64xf32> -> vector<8x64xf32>
    %64 = arith.addf %61, %63 : vector<8x64xf32>
    %65 = math.tanh %64 : vector<8x64xf32>
    %c7_i32 = arith.constant 7 : i32
    %c8_i32_31 = arith.constant 8 : i32
    %66 = arith.muli %c7_i32, %c8_i32_31 : i32
    %67 = tpu.assume_multiple %66, 8 : i32
    %68 = arith.index_cast %67 : i32 to index
    %c0_32 = arith.constant 0 : index
    %69 = vector.load %arg8[%68, %c0_32] : memref<64x64xf32, #tpu.memory_space<vmem>>, vector<8x64xf32>
    %70 = arith.truncf %65 : vector<8x64xf32> to vector<8x64xbf16>
    %cst_33 = arith.constant dense<0.000000e+00> : vector<8x64xf32>
    %71 = tpu.matmul %70, %8, %cst_33 {dimension_numbers = #tpu.dot_dimension_numbers<[1], [0], [0], [1], [0, 0, 1, 1], [], []>} : vector<8x64xbf16>, vector<64x64xbf16>, vector<8x64xf32> -> vector<8x64xf32>
    %72 = arith.addf %69, %71 : vector<8x64xf32>
    %73 = math.tanh %72 : vector<8x64xf32>
    %c8_i32_34 = arith.constant 8 : i32
    %74 = arith.truncf %73 : vector<8x64xf32> to vector<8x64xbf16>
    %c0_35 = arith.constant 0 : index
    %c0_36 = arith.constant 0 : index
    %75 = vector.load %arg5[%c0_35, %c0_36] : memref<64x128xbf16, #tpu.memory_space<vmem>>, vector<64x128xbf16>
    %cst_37 = arith.constant dense<0.000000e+00> : vector<8x128xf32>
    %76 = tpu.matmul %74, %75, %cst_37 {dimension_numbers = #tpu.dot_dimension_numbers<[1], [0], [0], [1], [0, 0, 1, 1], [], []>} : vector<8x64xbf16>, vector<64x128xbf16>, vector<8x128xf32> -> vector<8x128xf32>
    %c0_38 = arith.constant 0 : index
    %c0_39 = arith.constant 0 : index
    %77 = vector.load %arg6[%c0_38, %c0_39] : memref<1x128xf32, #tpu.memory_space<vmem>>, vector<1x128xf32>
    %78 = vector.broadcast %77 : vector<1x128xf32> to vector<8x128xf32>
    %79 = arith.addf %76, %78 : vector<8x128xf32>
    %c0_40 = arith.constant 0 : index
    %c0_41 = arith.constant 0 : index
    %80 = vector.load %arg7[%c0_40, %c0_41] : memref<8x128xf32, #tpu.memory_space<vmem>>, vector<8x128xf32>
    tpu.vector_store %arg7[%c0_40, %c0_41], %79 {strides = array<i32>} : memref<8x128xf32, #tpu.memory_space<vmem>>, vector<8x128xf32>,
    return
  }
  func.func @transform_0(%arg0: i32) -> (i32, i32, i32) {
    %c0_i32 = arith.constant 0 : i32
    %c0_i32_0 = arith.constant 0 : i32
    %c0_i32_1 = arith.constant 0 : i32
    return %arg0, %c0_i32, %c0_i32_0 : i32, i32, i32
  }
  func.func @transform_1(%arg0: i32) -> (i32, i32) {
    %c0_i32 = arith.constant 0 : i32
    %c0_i32_0 = arith.constant 0 : i32
    %c0_i32_1 = arith.constant 0 : i32
    return %c0_i32, %c0_i32_0 : i32, i32
  }
  func.func @transform_2(%arg0: i32) -> (i32, i32) {
    %c0_i32 = arith.constant 0 : i32
    %c0_i32_0 = arith.constant 0 : i32
    %c0_i32_1 = arith.constant 0 : i32
    return %c0_i32, %c0_i32_0 : i32, i32
  }
  func.func @transform_3(%arg0: i32) -> (i32, i32) {
    %c0_i32 = arith.constant 0 : i32
    %c0_i32_0 = arith.constant 0 : i32
    %c0_i32_1 = arith.constant 0 : i32
    return %c0_i32, %c0_i32_0 : i32, i32
  }
  func.func @transform_4(%arg0: i32) -> (i32, i32) {
    %c0_i32 = arith.constant 0 : i32
    %c0_i32_0 = arith.constant 0 : i32
    %c0_i32_1 = arith.constant 0 : i32
    return %c0_i32, %c0_i32_0 : i32, i32
  }
  func.func @transform_5(%arg0: i32) -> (i32, i32) {
    %c0_i32 = arith.constant 0 : i32
    %c0_i32_0 = arith.constant 0 : i32
    %c0_i32_1 = arith.constant 0 : i32
    return %c0_i32, %c0_i32_0 : i32, i32
  }
  func.func @transform_6(%arg0: i32) -> (i32, i32) {
    %c0_i32 = arith.constant 0 : i32
    %c0_i32_0 = arith.constant 0 : i32
    return %arg0, %c0_i32 : i32, i32
  }
}

</mosaic_0001>

<llo_original>
// kernel: tpu_custom_call.1
$region0: #{tpu_custom_call.1}
  #allocation0 [shape = 'u32[]', space=smem, size = 0x4, offset = 0x4, fixed_abs, tag = 'smem constant byte address 0x4 - core index']
  #allocation1 [shape = 'u32[144,128]{1,0:T(1,128)}', space=vmem, size = 0x12000, scoped, tag = 'internal scratch']
  #allocation2 [shape = 'f32[64,64]{1,0:T(8,128)}', space=vmem, size = 0x8000, scoped, tag = 'scratch operand']
  %s0 = inlined_call_operand.vmem [shape: bf16[1,64,16], index: 0, kind: input, shape index: {}]
  %s1 = inlined_call_operand.vmem [shape: bf16[16,64], index: 1, kind: input, shape index: {}]
  %s2 = inlined_call_operand.vmem [shape: f32[1,64], index: 2, kind: input, shape index: {}]
  %s3 = inlined_call_operand.vmem [shape: bf16[64,64], index: 3, kind: input, shape index: {}]
  %s4 = inlined_call_operand.hbm [shape: bf16[64,128], index: 4, kind: input, shape index: {}]
  %s5 = inlined_call_operand.vmem [shape: f32[1,128], index: 5, kind: input, shape index: {}]
  %s6 = inlined_call_operand.hbm [shape: f32[8,128], index: 6, kind: output, shape index: {}]
  %s7 = sld [smem:[#allocation0]]
  $region38: #{tpu_custom_call.1} parent=0
    _
  %s9 = ssub.s32 1, %s7
  %s10 = scalar_select 0, %s9, %s7
  $region1: #{tpu_custom_call.1} parent=0
    #allocation3 [shape = 'u8[16384]{0}', space=vmem, size = 0x4000, scoped, tag = 'input window, operand 4, single buffered']
    #allocation4 [shape = 's32[1]{0}', space=sflag, size = 0x4, scoped, tag = 'scoped memory for tpu_custom_call.1']
    #allocation5 [shape = 's32[1]{0}', space=sflag, size = 0x4, scoped, tag = 'scoped memory for tpu_custom_call.1']
    #allocation6 [shape = 'u8[4096]{0}', space=vmem, size = 0x1000, scoped, tag = 'output window, operand 0, single buffered']
    %11 = vsyncpa [#allocation4], 0
    %12 = vsyncpa [#allocation5], 0
    // Predicated region
    $region2: #{tpu_custom_call.1} parent=1 // pred_check
      _
    $region3: #{tpu_custom_call.1} parent=1 // pred_check_branch
      %14 = sbr.rel (0) target = $region5
    $region4: #{tpu_custom_call.1} parent=1 // pred_region
      _
    $region5: #{tpu_custom_call.1} parent=1 // pred_fallthru
      _
    // Predicated region
    $region6: #{tpu_custom_call.1} parent=1 // pred_check
      _
    $region7: #{tpu_custom_call.1} parent=1 // pred_check_branch
      %16 = sbr.rel (0) target = $region9
    $region8: #{tpu_custom_call.1} parent=1 // pred_region
      _
    $region9: #{tpu_custom_call.1} parent=1 // pred_fallthru
      _
    // Predicated region
    $region10: #{tpu_custom_call.1} parent=1 // pred_check
      _
    $region11: #{tpu_custom_call.1} parent=1 // pred_check_branch
      %18 = sbr.rel (0) target = $region13
    $region12: #{tpu_custom_call.1} parent=1 // pred_region
      _
    $region13: #{tpu_custom_call.1} parent=1 // pred_fallthru
      _
    // Predicated region
    $region14: #{tpu_custom_call.1} parent=1 // pred_check
      _
    $region15: #{tpu_custom_call.1} parent=1 // pred_check_branch
      %20 = sbr.rel (0) target = $region17
    $region16: #{tpu_custom_call.1} parent=1 // pred_region
      _
    $region17: #{tpu_custom_call.1} parent=1 // pred_fallthru
      _
    // Predicated region
    $region18: #{tpu_custom_call.1} parent=1 // pred_check
      _
    $region19: #{tpu_custom_call.1} parent=1 // pred_check_branch
      %22 = sbr.rel (0) target = $region21
    $region20: #{tpu_custom_call.1} parent=1 // pred_region
      %s24 = ssub.s32 512, 512
      %25 = vsyncadd [#allocation4], %s24
      %s26 = sshll.u32 [#allocation3], 4
      %s27 = int_to_ptr.vmem [resolvable:$true] %s26
      %32 = dma.hbm_to_vmem [thread:$0]  %s4, 512, %s27, [#allocation4], 64, 64, 4
    $region21: #{tpu_custom_call.1} parent=1 // pred_fallthru
      _
    // Predicated region
    $region22: #{tpu_custom_call.1} parent=1 // pred_check
      _
    $region23: #{tpu_custom_call.1} parent=1 // pred_check_branch
      %34 = sbr.rel (0) target = $region25
    $region24: #{tpu_custom_call.1} parent=1 // pred_region
      _
    $region25: #{tpu_custom_call.1} parent=1 // pred_fallthru
      _
    // Predicated region
    $region26: #{tpu_custom_call.1} parent=1 // pred_check
      _
    $region27: #{tpu_custom_call.1} parent=1 // pred_check_branch
      %36 = sbr.rel (0) target = $region29
    $region28: #{tpu_custom_call.1} parent=1 // pred_region
      %37 = dma.done [#allocation4], 512
    $region29: #{tpu_custom_call.1} parent=1 // pred_fallthru
      _
    %v39 = vld [vmem:[%s0] sm:$0xf]
    %v40 = vld [vmem:[%s0 + $0x4] sm:$0xf]
    %v41 = vld [vmem:[%s0 + $0x8] sm:$0xf]
    %v42 = vld [vmem:[%s0 + $0xc] sm:$0xf]
    %v43 = vld [vmem:[%s0 + $0x10] sm:$0xf]
    %v44 = vld [vmem:[%s0 + $0x14] sm:$0xf]
    %v45 = vld [vmem:[%s0 + $0x18] sm:$0xf]
    %v46 = vld [vmem:[%s0 + $0x1c] sm:$0xf]
    %v47 = vld [vmem:[%s1] sm:$0xf]
    %v48 = vld [vmem:[%s1 + $0x4] sm:$0xf]
    %v49 = vld [vmem:[%s2] sm:$0x1]
    %v51 = vlaneseq
    %v52 = vshrl.u32 %v51, 7
    %v53 = vsub.s32 0, %v52
    %v54 = vrot.slane %v49, %v53
    %v64 = vunpack.c.l.b16 %v39
    %v65 = vunpack.c.l.b16 %v40
    %v66 = vunpack.c.l.b16 %v41
    %v67 = vunpack.c.l.b16 %v42
    %v68 = vunpack.c.l.b16 %v43
    %v69 = vunpack.c.l.b16 %v44
    %v70 = vunpack.c.l.b16 %v45
    %v71 = vunpack.c.l.b16 %v46
    %v72 = vpack.c.b16 %v65, %v64
    %v73 = vpack.c.b16 %v67, %v66
    %v74 = vpack.c.b16 %v69, %v68
    %v75 = vpack.c.b16 %v71, %v70
    %v78 = vunpack.c.l.b16 %v47
    %v79 = vunpack.c.l.b16 %v48
    %v80 = vpack.c.b16 %v79, %v78
    %vm82 = vcmask 130048
    %v84 = vsel %vm82, %v72, 0
    %v87 = vsel %vm82, %v73, 0
    %v90 = vsel %vm82, %v74, 0
    %v93 = vsel %vm82, %v75, 0
    %95 = vmatprep.subr.bf16.mxu0 0
    %96 = vmatpush1.bf16.msra.mxu0 %v80
    %97 = vmatprep.subr.bf16.mxu0 0
    %98 = vmatpush1.bf16.msra.mxu0 0
    %99 = vmatprep.subr.bf16.mxu0 0
    %100 = vmatpush1.bf16.msra.mxu0 0
    %101 = vmatprep.subr.bf16.mxu0 0
    %102 = vmatpush1.bf16.msra.mxu0 0
    %103 = vmatprep.subr.bf16.mxu0 0
    %104 = vmatpush1.bf16.msra.mxu0 0
    %105 = vmatprep.subr.bf16.mxu0 0
    %106 = vmatpush1.bf16.msra.mxu0 0
    %107 = vmatprep.subr.bf16.mxu0 0
    %108 = vmatpush1.bf16.msra.mxu0 0
    %109 = vmatprep.subr.bf16.mxu0 0
    %110 = vmatpush1.bf16.msra.mxu0 0
    %111 = vmatprep.subr.bf16.mxu0 0
    %112 = vmatpush1.bf16.msra.mxu0 0
    %113 = vmatprep.subr.bf16.mxu0 0
    %114 = vmatpush1.bf16.msra.mxu0 0
    %115 = vmatprep.subr.bf16.mxu0 0
    %116 = vmatpush1.bf16.msra.mxu0 0
    %117 = vmatprep.subr.bf16.mxu0 0
    %118 = vmatpush1.bf16.msra.mxu0 0
    %119 = vmatprep.subr.bf16.mxu0 0
    %120 = vmatpush1.bf16.msra.mxu0 0
    %121 = vmatprep.subr.bf16.mxu0 0
    %122 = vmatpush1.bf16.msra.mxu0 0
    %123 = vmatprep.subr.bf16.mxu0 0
    %124 = vmatpush1.bf16.msra.mxu0 0
    %125 = vmatprep.subr.bf16.mxu0 0
    %126 = vmatpush1.bf16.msra.mxu0 0
    %127 = vmatprep.mubr.bf16.mxu0 0
    %128 = vmatmul.mubr.bf16.gmra.mrb[0].mxu0 %v84
    %v129 = vpop.f32.mrb[0].mxu0
    %v130 = vadd.f32 %v54, %v129
    %v131 = vpop.f32.mrb[0].mxu0
    %v132 = vpop.f32.mrb[0].mxu0
    %v133 = vadd.f32 %v54, %v132
    %v134 = vpop.f32.mrb[0].mxu0
    %135 = vmatprep.mubr.bf16.mxu0 0
    %136 = vmatmul.mubr.bf16.gmra.mrb[0].mxu0 %v87
    %v137 = vpop.f32.mrb[0].mxu0
    %v138 = vadd.f32 %v54, %v137
    %v139 = vpop.f32.mrb[0].mxu0
    %v140 = vpop.f32.mrb[0].mxu0
    %v141 = vadd.f32 %v54, %v140
    %v142 = vpop.f32.mrb[0].mxu0
    %143 = vmatprep.mubr.bf16.mxu0 0
    %144 = vmatmul.mubr.bf16.gmra.mrb[0].mxu0 %v90
    %v145 = vpop.f32.mrb[0].mxu0
    %v146 = vadd.f32 %v54, %v145
    %v147 = vpop.f32.mrb[0].mxu0
    %v148 = vpop.f32.mrb[0].mxu0
    %v149 = vadd.f32 %v54, %v148
    %v150 = vpop.f32.mrb[0].mxu0
    %151 = vmatprep.mubr.bf16.mxu0 0
    %152 = vmatmul.mubr.bf16.gmra.mrb[0].mxu0 %v93
    %v153 = vpop.f32.mrb[0].mxu0
    %v154 = vadd.f32 %v54, %v153
    %v155 = vpop.f32.mrb[0].mxu0
    %v156 = vpop.f32.mrb[0].mxu0
    %v157 = vadd.f32 %v54, %v156
    %v158 = vpop.f32.mrb[0].mxu0
    %159 = vdwg.mxu0
    %vm160 = vcmask 523264
    %161 = vst.msk [vmem:[#allocation2] sm:$0xff] %vm160, %v130
    %162 = vst.msk [vmem:[#allocation2 + $0x8] sm:$0xff] %vm160, %v133
    %163 = vst.msk [vmem:[#allocation2 + $0x10] sm:$0xff] %vm160, %v138
    %164 = vst.msk [vmem:[#allocation2 + $0x18] sm:$0xff] %vm160, %v141
    %165 = vst.msk [vmem:[#allocation2 + $0x20] sm:$0xff] %vm160, %v146
    %166 = vst.msk [vmem:[#allocation2 + $0x28] sm:$0xff] %vm160, %v149
    %167 = vst.msk [vmem:[#allocation2 + $0x30] sm:$0xff] %vm160, %v154
    %168 = vst.msk [vmem:[#allocation2 + $0x38] sm:$0xff] %vm160, %v157
    %v169 = vld [vmem:[%s3] sm:$0xf]
    %v170 = vld [vmem:[%s3 + $0x4] sm:$0xf]
    %v171 = vld [vmem:[%s3 + $0x8] sm:$0xf]
    %v172 = vld [vmem:[%s3 + $0xc] sm:$0xf]
    %v173 = vld [vmem:[%s3 + $0x10] sm:$0xf]
    %v174 = vld [vmem:[%s3 + $0x14] sm:$0xf]
    %v175 = vld [vmem:[%s3 + $0x18] sm:$0xf]
    %v176 = vld [vmem:[%s3 + $0x1c] sm:$0xf]
    %v177 = vld [vmem:[#allocation2] sm:$0xff]
    %v186 = vunpack.c.l.b16 %v169
    %v187 = vunpack.c.l.b16 %v170
    %v188 = vunpack.c.l.b16 %v171
    %v189 = vunpack.c.l.b16 %v172
    %v190 = vunpack.c.l.b16 %v173
    %v191 = vunpack.c.l.b16 %v174
    %v192 = vunpack.c.l.b16 %v175
    %v193 = vunpack.c.l.b16 %v176
    %v194 = vpack.c.b16 %v187, %v186
    %v195 = vpack.c.b16 %v189, %v188
    %v196 = vpack.c.b16 %v191, %v190
    %v197 = vpack.c.b16 %v193, %v192
    %v203 = vsel %vm160, 0, 0
    %205 = vmatprep.subr.bf16.mxu0 0
    %206 = vmatpush1.bf16.msra.mxu0 %v194
    %207 = vmatprep.subr.bf16.mxu0 0
    %208 = vmatpush1.bf16.msra.mxu0 %v195
    %209 = vmatprep.subr.bf16.mxu0 0
    %210 = vmatpush1.bf16.msra.mxu0 %v196
    %211 = vmatprep.subr.bf16.mxu0 0
    %212 = vmatpush1.bf16.msra.mxu0 %v197
    %213 = vmatprep.subr.bf16.mxu0 0
    %214 = vmatpush1.bf16.msra.mxu0 0
    %215 = vmatprep.subr.bf16.mxu0 0
    %216 = vmatpush1.bf16.msra.mxu0 0
    %217 = vmatprep.subr.bf16.mxu0 0
    %218 = vmatpush1.bf16.msra.mxu0 0
    %219 = vmatprep.subr.bf16.mxu0 0
    %220 = vmatpush1.bf16.msra.mxu0 0
    %221 = vmatprep.subr.bf16.mxu0 0
    %222 = vmatpush1.bf16.msra.mxu0 0
    %223 = vmatprep.subr.bf16.mxu0 0
    %224 = vmatpush1.bf16.msra.mxu0 0
    %225 = vmatprep.subr.bf16.mxu0 0
    %226 = vmatpush1.bf16.msra.mxu0 0
    %227 = vmatprep.subr.bf16.mxu0 0
    %228 = vmatpush1.bf16.msra.mxu0 0
    %229 = vmatprep.subr.bf16.mxu0 0
    %230 = vmatpush1.bf16.msra.mxu0 0
    %231 = vmatprep.subr.bf16.mxu0 0
    %232 = vmatpush1.bf16.msra.mxu0 0
    %233 = vmatprep.subr.bf16.mxu0 0
    %234 = vmatpush1.bf16.msra.mxu0 0
    %235 = vmatprep.subr.bf16.mxu0 0
    %236 = vmatpush1.bf16.msra.mxu0 0
    %237 = vmatprep.mubr.bf16.mxu0 0
    %238 = vmatmul.mubr.bf16.gmra.mrb[0].mxu0 %v203
    %v239 = vpop.f32.mrb[0].mxu0
    %v240 = vadd.f32 0.0, %v239
    %v241 = vpop.f32.mrb[0].mxu0
    %v242 = vpop.f32.mrb[0].mxu0
    %v243 = vpop.f32.mrb[0].mxu0
    %244 = vdwg.mxu0
    %v245 = vadd.f32 %v177, %v240
    %v246 = vtanh.pop %v245
    %s247 = scalar_lea.vmem [#allocation2], 8
    %v248 = vld [vmem:[%s247] sm:$0xff]
    %v249 = vpack.c.bf16 %v246, %v246
    %v251 = vsel %vm160, %v249, 0
    %253 = vmatprep.subr.bf16.mxu0 0
    %254 = vmatpush1.bf16.msra.mxu0 %v194
    %255 = vmatprep.subr.bf16.mxu0 0
    %256 = vmatpush1.bf16.msra.mxu0 %v195
    %257 = vmatprep.subr.bf16.mxu0 0
    %258 = vmatpush1.bf16.msra.mxu0 %v196
    %259 = vmatprep.subr.bf16.mxu0 0
    %260 = vmatpush1.bf16.msra.mxu0 %v197
    %261 = vmatprep.subr.bf16.mxu0 0
    %262 = vmatpush1.bf16.msra.mxu0 0
    %263 = vmatprep.subr.bf16.mxu0 0
    %264 = vmatpush1.bf16.msra.mxu0 0
    %265 = vmatprep.subr.bf16.mxu0 0
    %266 = vmatpush1.bf16.msra.mxu0 0
    %267 = vmatprep.subr.bf16.mxu0 0
    %268 = vmatpush1.bf16.msra.mxu0 0
    %269 = vmatprep.subr.bf16.mxu0 0
    %270 = vmatpush1.bf16.msra.mxu0 0
    %271 = vmatprep.subr.bf16.mxu0 0
    %272 = vmatpush1.bf16.msra.mxu0 0
    %273 = vmatprep.subr.bf16.mxu0 0
    %274 = vmatpush1.bf16.msra.mxu0 0
    %275 = vmatprep.subr.bf16.mxu0 0
    %276 = vmatpush1.bf16.msra.mxu0 0
    %277 = vmatprep.subr.bf16.mxu0 0
    %278 = vmatpush1.bf16.msra.mxu0 0
    %279 = vmatprep.subr.bf16.mxu0 0
    %280 = vmatpush1.bf16.msra.mxu0 0
    %281 = vmatprep.subr.bf16.mxu0 0
    %282 = vmatpush1.bf16.msra.mxu0 0
    %283 = vmatprep.subr.bf16.mxu0 0
    %284 = vmatpush1.bf16.msra.mxu0 0
    %285 = vmatprep.mubr.bf16.mxu0 0
    %286 = vmatmul.mubr.bf16.gmra.mrb[0].mxu0 %v251
    %v287 = vpop.f32.mrb[0].mxu0
    %v288 = vadd.f32 0.0, %v287
    %v289 = vpop.f32.mrb[0].mxu0
    %v290 = vpop.f32.mrb[0].mxu0
    %v291 = vpop.f32.mrb[0].mxu0
    %292 = vdwg.mxu0
    %v293 = vadd.f32 %v248, %v288
    %v294 = vtanh.pop %v293
    %s295 = scalar_lea.vmem [#allocation2], 16
    %v296 = vld [vmem:[%s295] sm:$0xff]
    %v297 = vpack.c.bf16 %v294, %v294
    %v299 = vsel %vm160, %v297, 0
    %301 = vmatprep.subr.bf16.mxu0 0
    %302 = vmatpush1.bf16.msra.mxu0 %v194
    %303 = vmatprep.subr.bf16.mxu0 0
    %304 = vmatpush1.bf16.msra.mxu0 %v195
    %305 = vmatprep.subr.bf16.mxu0 0
    %306 = vmatpush1.bf16.msra.mxu0 %v196
    %307 = vmatprep.subr.bf16.mxu0 0
    %308 = vmatpush1.bf16.msra.mxu0 %v197
    %309 = vmatprep.subr.bf16.mxu0 0
    %310 = vmatpush1.bf16.msra.mxu0 0
    %311 = vmatprep.subr.bf16.mxu0 0
    %312 = vmatpush1.bf16.msra.mxu0 0
    %313 = vmatprep.subr.bf16.mxu0 0
    %314 = vmatpush1.bf16.msra.mxu0 0
    %315 = vmatprep.subr.bf16.mxu0 0
    %316 = vmatpush1.bf16.msra.mxu0 0
    %317 = vmatprep.subr.bf16.mxu0 0
    %318 = vmatpush1.bf16.msra.mxu0 0
    %319 = vmatprep.subr.bf16.mxu0 0
    %320 = vmatpush1.bf16.msra.mxu0 0
    %321 = vmatprep.subr.bf16.mxu0 0
    %322 = vmatpush1.bf16.msra.mxu0 0
    %323 = vmatprep.subr.bf16.mxu0 0
    %324 = vmatpush1.bf16.msra.mxu0 0
    %325 = vmatprep.subr.bf16.mxu0 0
    %326 = vmatpush1.bf16.msra.mxu0 0
    %327 = vmatprep.subr.bf16.mxu0 0
    %328 = vmatpush1.bf16.msra.mxu0 0
    %329 = vmatprep.subr.bf16.mxu0 0
    %330 = vmatpush1.bf16.msra.mxu0 0
    %331 = vmatprep.subr.bf16.mxu0 0
    %332 = vmatpush1.bf16.msra.mxu0 0
    %333 = vmatprep.mubr.bf16.mxu0 0
    %334 = vmatmul.mubr.bf16.gmra.mrb[0].mxu0 %v299
    %v335 = vpop.f32.mrb[0].mxu0
    %v336 = vadd.f32 0.0, %v335
    %v337 = vpop.f32.mrb[0].mxu0
    %v338 = vpop.f32.mrb[0].mxu0
    %v339 = vpop.f32.mrb[0].mxu0
    %340 = vdwg.mxu0
    %v341 = vadd.f32 %v296, %v336
    %v342 = vtanh.pop %v341
    %s343 = scalar_lea.vmem [#allocation2], 24
    %v344 = vld [vmem:[%s343] sm:$0xff]
    %v345 = vpack.c.bf16 %v342, %v342
    %v347 = vsel %vm160, %v345, 0
    %349 = vmatprep.subr.bf16.mxu0 0
    %350 = vmatpush1.bf16.msra.mxu0 %v194
    %351 = vmatprep.subr.bf16.mxu0 0
    %352 = vmatpush1.bf16.msra.mxu0 %v195
    %353 = vmatprep.subr.bf16.mxu0 0
    %354 = vmatpush1.bf16.msra.mxu0 %v196
    %355 = vmatprep.subr.bf16.mxu0 0
    %356 = vmatpush1.bf16.msra.mxu0 %v197
    %357 = vmatprep.subr.bf16.mxu0 0
    %358 = vmatpush1.bf16.msra.mxu0 0
    %359 = vmatprep.subr.bf16.mxu0 0
    %360 = vmatpush1.bf16.msra.mxu0 0
    %361 = vmatprep.subr.bf16.mxu0 0
    %362 = vmatpush1.bf16.msra.mxu0 0
    %363 = vmatprep.subr.bf16.mxu0 0
    %364 = vmatpush1.bf16.msra.mxu0 0
    %365 = vmatprep.subr.bf16.mxu0 0
    %366 = vmatpush1.bf16.msra.mxu0 0
    %367 = vmatprep.subr.bf16.mxu0 0
    %368 = vmatpush1.bf16.msra.mxu0 0
    %369 = vmatprep.subr.bf16.mxu0 0
    %370 = vmatpush1.bf16.msra.mxu0 0
    %371 = vmatprep.subr.bf16.mxu0 0
    %372 = vmatpush1.bf16.msra.mxu0 0
    %373 = vmatprep.subr.bf16.mxu0 0
    %374 = vmatpush1.bf16.msra.mxu0 0
    %375 = vmatprep.subr.bf16.mxu0 0
    %376 = vmatpush1.bf16.msra.mxu0 0
    %377 = vmatprep.subr.bf16.mxu0 0
    %378 = vmatpush1.bf16.msra.mxu0 0
    %379 = vmatprep.subr.bf16.mxu0 0
    %380 = vmatpush1.bf16.msra.mxu0 0
    %381 = vmatprep.mubr.bf16.mxu0 0
    %382 = vmatmul.mubr.bf16.gmra.mrb[0].mxu0 %v347
    %v383 = vpop.f32.mrb[0].mxu0
    %v384 = vadd.f32 0.0, %v383
    %v385 = vpop.f32.mrb[0].mxu0
    %v386 = vpop.f32.mrb[0].mxu0
    %v387 = vpop.f32.mrb[0].mxu0
    %388 = vdwg.mxu0
    %v389 = vadd.f32 %v344, %v384
    %v390 = vtanh.pop %v389
    %s391 = scalar_lea.vmem [#allocation2], 32
    %v392 = vld [vmem:[%s391] sm:$0xff]
    %v393 = vpack.c.bf16 %v390, %v390
    %v395 = vsel %vm160, %v393, 0
    %397 = vmatprep.subr.bf16.mxu0 0
    %398 = vmatpush1.bf16.msra.mxu0 %v194
    %399 = vmatprep.subr.bf16.mxu0 0
    %400 = vmatpush1.bf16.msra.mxu0 %v195
    %401 = vmatprep.subr.bf16.mxu0 0
    %402 = vmatpush1.bf16.msra.mxu0 %v196
    %403 = vmatprep.subr.bf16.mxu0 0
    %404 = vmatpush1.bf16.msra.mxu0 %v197
    %405 = vmatprep.subr.bf16.mxu0 0
    %406 = vmatpush1.bf16.msra.mxu0 0
    %407 = vmatprep.subr.bf16.mxu0 0
    %408 = vmatpush1.bf16.msra.mxu0 0
    %409 = vmatprep.subr.bf16.mxu0 0
    %410 = vmatpush1.bf16.msra.mxu0 0
    %411 = vmatprep.subr.bf16.mxu0 0
    %412 = vmatpush1.bf16.msra.mxu0 0
    %413 = vmatprep.subr.bf16.mxu0 0
    %414 = vmatpush1.bf16.msra.mxu0 0
    %415 = vmatprep.subr.bf16.mxu0 0
    %416 = vmatpush1.bf16.msra.mxu0 0
    %417 = vmatprep.subr.bf16.mxu0 0
    %418 = vmatpush1.bf16.msra.mxu0 0
    %419 = vmatprep.subr.bf16.mxu0 0
    %420 = vmatpush1.bf16.msra.mxu0 0
    %421 = vmatprep.subr.bf16.mxu0 0
    %422 = vmatpush1.bf16.msra.mxu0 0
    %423 = vmatprep.subr.bf16.mxu0 0
    %424 = vmatpush1.bf16.msra.mxu0 0
    %425 = vmatprep.subr.bf16.mxu0 0
    %426 = vmatpush1.bf16.msra.mxu0 0
    %427 = vmatprep.subr.bf16.mxu0 0
    %428 = vmatpush1.bf16.msra.mxu0 0
    %429 = vmatprep.mubr.bf16.mxu0 0
    %430 = vmatmul.mubr.bf16.gmra.mrb[0].mxu0 %v395
    %v431 = vpop.f32.mrb[0].mxu0
    %v432 = vadd.f32 0.0, %v431
    %v433 = vpop.f32.mrb[0].mxu0
    %v434 = vpop.f32.mrb[0].mxu0
    %v435 = vpop.f32.mrb[0].mxu0
    %436 = vdwg.mxu0
    %v437 = vadd.f32 %v392, %v432
    %v438 = vtanh.pop %v437
    %s439 = scalar_lea.vmem [#allocation2], 40
    %v440 = vld [vmem:[%s439] sm:$0xff]
    %v441 = vpack.c.bf16 %v438, %v438
    %v443 = vsel %vm160, %v441, 0
    %445 = vmatprep.subr.bf16.mxu0 0
    %446 = vmatpush1.bf16.msra.mxu0 %v194
    %447 = vmatprep.subr.bf16.mxu0 0
    %448 = vmatpush1.bf16.msra.mxu0 %v195
    %449 = vmatprep.subr.bf16.mxu0 0
    %450 = vmatpush1.bf16.msra.mxu0 %v196
    %451 = vmatprep.subr.bf16.mxu0 0
    %452 = vmatpush1.bf16.msra.mxu0 %v197
    %453 = vmatprep.subr.bf16.mxu0 0
    %454 = vmatpush1.bf16.msra.mxu0 0
    %455 = vmatprep.subr.bf16.mxu0 0
    %456 = vmatpush1.bf16.msra.mxu0 0
    %457 = vmatprep.subr.bf16.mxu0 0
    %458 = vmatpush1.bf16.msra.mxu0 0
    %459 = vmatprep.subr.bf16.mxu0 0
    %460 = vmatpush1.bf16.msra.mxu0 0
    %461 = vmatprep.subr.bf16.mxu0 0
    %462 = vmatpush1.bf16.msra.mxu0 0
    %463 = vmatprep.subr.bf16.mxu0 0
    %464 = vmatpush1.bf16.msra.mxu0 0
    %465 = vmatprep.subr.bf16.mxu0 0
    %466 = vmatpush1.bf16.msra.mxu0 0
    %467 = vmatprep.subr.bf16.mxu0 0
    %468 = vmatpush1.bf16.msra.mxu0 0
    %469 = vmatprep.subr.bf16.mxu0 0
    %470 = vmatpush1.bf16.msra.mxu0 0
    %471 = vmatprep.subr.bf16.mxu0 0
    %472 = vmatpush1.bf16.msra.mxu0 0
    %473 = vmatprep.subr.bf16.mxu0 0
    %474 = vmatpush1.bf16.msra.mxu0 0
    %475 = vmatprep.subr.bf16.mxu0 0
    %476 = vmatpush1.bf16.msra.mxu0 0
    %477 = vmatprep.mubr.bf16.mxu0 0
    %478 = vmatmul.mubr.bf16.gmra.mrb[0].mxu0 %v443
    %v479 = vpop.f32.mrb[0].mxu0
    %v480 = vadd.f32 0.0, %v479
    %v481 = vpop.f32.mrb[0].mxu0
    %v482 = vpop.f32.mrb[0].mxu0
    %v483 = vpop.f32.mrb[0].mxu0
    %484 = vdwg.mxu0
    %v485 = vadd.f32 %v440, %v480
    %v486 = vtanh.pop %v485
    %s487 = scalar_lea.vmem [#allocation2], 48
    %v488 = vld [vmem:[%s487] sm:$0xff]
    %v489 = vpack.c.bf16 %v486, %v486
    %v491 = vsel %vm160, %v489, 0
    %493 = vmatprep.subr.bf16.mxu0 0
    %494 = vmatpush1.bf16.msra.mxu0 %v194
    %495 = vmatprep.subr.bf16.mxu0 0
    %496 = vmatpush1.bf16.msra.mxu0 %v195
    %497 = vmatprep.subr.bf16.mxu0 0
    %498 = vmatpush1.bf16.msra.mxu0 %v196
    %499 = vmatprep.subr.bf16.mxu0 0
    %500 = vmatpush1.bf16.msra.mxu0 %v197
    %501 = vmatprep.subr.bf16.mxu0 0
    %502 = vmatpush1.bf16.msra.mxu0 0
    %503 = vmatprep.subr.bf16.mxu0 0
    %504 = vmatpush1.bf16.msra.mxu0 0
    %505 = vmatprep.subr.bf16.mxu0 0
    %506 = vmatpush1.bf16.msra.mxu0 0
    %507 = vmatprep.subr.bf16.mxu0 0
    %508 = vmatpush1.bf16.msra.mxu0 0
    %509 = vmatprep.subr.bf16.mxu0 0
    %510 = vmatpush1.bf16.msra.mxu0 0
    %511 = vmatprep.subr.bf16.mxu0 0
    %512 = vmatpush1.bf16.msra.mxu0 0
    %513 = vmatprep.subr.bf16.mxu0 0
    %514 = vmatpush1.bf16.msra.mxu0 0
    %515 = vmatprep.subr.bf16.mxu0 0
    %516 = vmatpush1.bf16.msra.mxu0 0
    %517 = vmatprep.subr.bf16.mxu0 0
    %518 = vmatpush1.bf16.msra.mxu0 0
    %519 = vmatprep.subr.bf16.mxu0 0
    %520 = vmatpush1.bf16.msra.mxu0 0
    %521 = vmatprep.subr.bf16.mxu0 0
    %522 = vmatpush1.bf16.msra.mxu0 0
    %523 = vmatprep.subr.bf16.mxu0 0
    %524 = vmatpush1.bf16.msra.mxu0 0
    %525 = vmatprep.mubr.bf16.mxu0 0
    %526 = vmatmul.mubr.bf16.gmra.mrb[0].mxu0 %v491
    %v527 = vpop.f32.mrb[0].mxu0
    %v528 = vadd.f32 0.0, %v527
    %v529 = vpop.f32.mrb[0].mxu0
    %v530 = vpop.f32.mrb[0].mxu0
    %v531 = vpop.f32.mrb[0].mxu0
    %532 = vdwg.mxu0
    %v533 = vadd.f32 %v488, %v528
    %v534 = vtanh.pop %v533
    %s535 = scalar_lea.vmem [#allocation2], 56
    %v536 = vld [vmem:[%s535] sm:$0xff]
    %v537 = vpack.c.bf16 %v534, %v534
    %v539 = vsel %vm160, %v537, 0
    %541 = vmatprep.subr.bf16.mxu0 0
    %542 = vmatpush1.bf16.msra.mxu0 %v194
    %543 = vmatprep.subr.bf16.mxu0 0
    %544 = vmatpush1.bf16.msra.mxu0 %v195
    %545 = vmatprep.subr.bf16.mxu0 0
    %546 = vmatpush1.bf16.msra.mxu0 %v196
    %547 = vmatprep.subr.bf16.mxu0 0
    %548 = vmatpush1.bf16.msra.mxu0 %v197
    %549 = vmatprep.subr.bf16.mxu0 0
    %550 = vmatpush1.bf16.msra.mxu0 0
    %551 = vmatprep.subr.bf16.mxu0 0
    %552 = vmatpush1.bf16.msra.mxu0 0
    %553 = vmatprep.subr.bf16.mxu0 0
    %554 = vmatpush1.bf16.msra.mxu0 0
    %555 = vmatprep.subr.bf16.mxu0 0
    %556 = vmatpush1.bf16.msra.mxu0 0
    %557 = vmatprep.subr.bf16.mxu0 0
    %558 = vmatpush1.bf16.msra.mxu0 0
    %559 = vmatprep.subr.bf16.mxu0 0
    %560 = vmatpush1.bf16.msra.mxu0 0
    %561 = vmatprep.subr.bf16.mxu0 0
    %562 = vmatpush1.bf16.msra.mxu0 0
    %563 = vmatprep.subr.bf16.mxu0 0
    %564 = vmatpush1.bf16.msra.mxu0 0
    %565 = vmatprep.subr.bf16.mxu0 0
    %566 = vmatpush1.bf16.msra.mxu0 0
    %567 = vmatprep.subr.bf16.mxu0 0
    %568 = vmatpush1.bf16.msra.mxu0 0
    %569 = vmatprep.subr.bf16.mxu0 0
    %570 = vmatpush1.bf16.msra.mxu0 0
    %571 = vmatprep.subr.bf16.mxu0 0
    %572 = vmatpush1.bf16.msra.mxu0 0
    %573 = vmatprep.mubr.bf16.mxu0 0
    %574 = vmatmul.mubr.bf16.gmra.mrb[0].mxu0 %v539
    %v575 = vpop.f32.mrb[0].mxu0
    %v576 = vadd.f32 0.0, %v575
    %v577 = vpop.f32.mrb[0].mxu0
    %v578 = vpop.f32.mrb[0].mxu0
    %v579 = vpop.f32.mrb[0].mxu0
    %580 = vdwg.mxu0
    %v581 = vadd.f32 %v536, %v576
    %v582 = vtanh.pop %v581
    %v583 = vpack.c.bf16 %v582, %v582
    %v584 = vld [vmem:[#allocation3] sm:$0xf]
    %v585 = vld [vmem:[#allocation3 + $0x4] sm:$0xf]
    %v586 = vld [vmem:[#allocation3 + $0x8] sm:$0xf]
    %v587 = vld [vmem:[#allocation3 + $0xc] sm:$0xf]
    %v588 = vld [vmem:[#allocation3 + $0x10] sm:$0xf]
    %v589 = vld [vmem:[#allocation3 + $0x14] sm:$0xf]
    %v590 = vld [vmem:[#allocation3 + $0x18] sm:$0xf]
    %v591 = vld [vmem:[#allocation3 + $0x1c] sm:$0xf]
    %v592 = vld [vmem:[%s5] sm:$0x1]
    %v594 = vlaneseq
    %v595 = vshrl.u32 %v594, 7
    %v596 = vsub.s32 0, %v595
    %v597 = vrot.slane %v592, %v596
    %v607 = vunpack.c.l.b16 %v584
    %v608 = vunpack.c.l.b16 %v585
    %v609 = vunpack.c.l.b16 %v586
    %v610 = vunpack.c.l.b16 %v587
    %v611 = vunpack.c.l.b16 %v588
    %v612 = vunpack.c.l.b16 %v589
    %v613 = vunpack.c.l.b16 %v590
    %v614 = vunpack.c.l.b16 %v591
    %v615 = vpack.c.b16 %v608, %v607
    %v616 = vpack.c.b16 %v610, %v609
    %v617 = vpack.c.b16 %v612, %v611
    %v618 = vpack.c.b16 %v614, %v613
    %v624 = vsel %vm160, %v583, 0
    %626 = vmatprep.subr.bf16.mxu0 0
    %627 = vmatpush1.bf16.msra.mxu0 %v615
    %628 = vmatprep.subr.bf16.mxu0 0
    %629 = vmatpush1.bf16.msra.mxu0 %v616
    %630 = vmatprep.subr.bf16.mxu0 0
    %631 = vmatpush1.bf16.msra.mxu0 %v617
    %632 = vmatprep.subr.bf16.mxu0 0
    %633 = vmatpush1.bf16.msra.mxu0 %v618
    %634 = vmatprep.subr.bf16.mxu0 0
    %635 = vmatpush1.bf16.msra.mxu0 0
    %636 = vmatprep.subr.bf16.mxu0 0
    %637 = vmatpush1.bf16.msra.mxu0 0
    %638 = vmatprep.subr.bf16.mxu0 0
    %639 = vmatpush1.bf16.msra.mxu0 0
    %640 = vmatprep.subr.bf16.mxu0 0
    %641 = vmatpush1.bf16.msra.mxu0 0
    %642 = vmatprep.subr.bf16.mxu0 0
    %643 = vmatpush1.bf16.msra.mxu0 0
    %644 = vmatprep.subr.bf16.mxu0 0
    %645 = vmatpush1.bf16.msra.mxu0 0
    %646 = vmatprep.subr.bf16.mxu0 0
    %647 = vmatpush1.bf16.msra.mxu0 0
    %648 = vmatprep.subr.bf16.mxu0 0
    %649 = vmatpush1.bf16.msra.mxu0 0
    %650 = vmatprep.subr.bf16.mxu0 0
    %651 = vmatpush1.bf16.msra.mxu0 0
    %652 = vmatprep.subr.bf16.mxu0 0
    %653 = vmatpush1.bf16.msra.mxu0 0
    %654 = vmatprep.subr.bf16.mxu0 0
    %655 = vmatpush1.bf16.msra.mxu0 0
    %656 = vmatprep.subr.bf16.mxu0 0
    %657 = vmatpush1.bf16.msra.mxu0 0
    %658 = vmatprep.mubr.bf16.mxu0 0
    %659 = vmatmul.mubr.bf16.gmra.mrb[0].mxu0 %v624
    %v660 = vpop.f32.mrb[0].mxu0
    %v661 = vadd.f32 %v597, %v660
    %v662 = vpop.f32.mrb[0].mxu0
    %v663 = vpop.f32.mrb[0].mxu0
    %v664 = vpop.f32.mrb[0].mxu0
    %665 = vdwg.mxu0
    %666 = vst [vmem:[#allocation6] sm:$0xff] %v661
    // Predicated region
    $region30: #{tpu_custom_call.1} parent=1 // pred_check
      _
    $region31: #{tpu_custom_call.1} parent=1 // pred_check_branch
      %668 = sbr.rel (0) target = $region33
    $region32: #{tpu_custom_call.1} parent=1 // pred_region
      %s670 = ssub.s32 128, 128
      %671 = vsyncadd [#allocation5], %s670
      %s673 = sshll.u32 [#allocation6], 4
      %s674 = int_to_ptr.vmem [resolvable:$true] %s673
      %676 = dma.vmem_to_hbm [thread:$0]  %s674, 128, %s6, [#allocation5]
    $region33: #{tpu_custom_call.1} parent=1 // pred_fallthru
      _
    // Predicated region
    $region34: #{tpu_custom_call.1} parent=1 // pred_check
      _
    $region35: #{tpu_custom_call.1} parent=1 // pred_check_branch
      %678 = sbr.rel (0) target = $region37
    $region36: #{tpu_custom_call.1} parent=1 // pred_region
      %679 = dma.done [#allocation5], 128
    $region37: #{tpu_custom_call.1} parent=1 // pred_fallthru
      _
    %680 = vsyncpa [#allocation4], 1
    %681 = vsyncpa [#allocation5], 1

</llo_original>
